<compile_context>
chip_gen: v5e
topology: v5e:2x2
jax: 0.10.0
libtpu: 0.0.40
codegen_flags: <defaults>
</compile_context>

<pallas_src>
import jax
import jax.numpy as jnp
from jax.experimental import pallas as pl
from jax.experimental.pallas import tpu as pltpu


def mlp_kernel(xT_ref,
               w1_ref, b1_ref,
               w2_ref, b2_ref,
               w3_ref, b3_ref,
               w4_ref, b4_ref,
               t_ref,
               oT_ref):
    # Transposed layout: batch is the last (lane) dim of every tensor.
    xT = xT_ref[...]                                                    # (20, TB)

    # Layer 1: Linear(20 -> 23) + ReLU
    h = jnp.dot(w1_ref[...], xT, preferred_element_type=jnp.float32) + b1_ref[...]
    h = jnp.maximum(h, 0.0)                                             # (23, TB)

    # Layer 2: Linear(23 -> 23) + ReLU
    h = jnp.dot(w2_ref[...], h, preferred_element_type=jnp.float32) + b2_ref[...]
    h = jnp.maximum(h, 0.0)                                             # (23, TB)

    # Layer 3: Linear(23 -> 20) + ReLU
    h = jnp.dot(w3_ref[...], h, preferred_element_type=jnp.float32) + b3_ref[...]
    h = jnp.maximum(h, 0.0)                                             # (20, TB)

    # Layer 4: Linear(20 -> 5) + sigmoid, then add broadcast test_tensor (5,1)
    y = jnp.dot(w4_ref[...], h, preferred_element_type=jnp.float32) + b4_ref[...]
    y = jax.nn.sigmoid(y) + t_ref[...]                                  # (5, TB)
    oT_ref[...] = y.astype(oT_ref.dtype)


def normal_model_forward(x, params, *, tb_target=1024):
    """x: (B, 20) float32.  params: PyTorch-layout weights (out,in), biases (out,), t (1,5)."""
    B, f_in = x.shape
    assert f_in == 20

    # Batch tile: big tiles amortize per-step overhead; pad B so every block is full
    # (also keeps the lane dim a multiple of 128).
    TB = tb_target if B >= tb_target else max(128, pl.cdiv(B, 128) * 128)
    B_pad = pl.cdiv(B, TB) * TB
    n_tiles = B_pad // TB

    xT = jnp.zeros((f_in, B_pad), jnp.float32).at[:, :B].set(x.T)

    w1, w2, w3, w4 = params["w1"], params["w2"], params["w3"], params["w4"]
    b1 = params["b1"].reshape(-1, 1)       # (23, 1)
    b2 = params["b2"].reshape(-1, 1)       # (23, 1)
    b3 = params["b3"].reshape(-1, 1)       # (20, 1)
    b4 = params["b4"].reshape(-1, 1)       # (5, 1)
    t = params["t"].reshape(-1, 1)         # (5, 1)

    # Weights / biases / t: full-array VMEM blocks, constant index_map -> DMA'd once.
    full = lambda a: pl.BlockSpec(a.shape, lambda i: (0, 0))

    flops = 2 * (20 * 23 + 23 * 23 + 23 * 20 + 20 * 5) * B_pad
    param_bytes = 4 * (20 * 23 + 23 + 23 * 23 + 23 + 23 * 20 + 20 + 20 * 5 + 5 + 5)
    bytes_accessed = 4 * B_pad * (20 + 5) + param_bytes

    outT = pl.pallas_call(
        mlp_kernel,
        out_shape=jax.ShapeDtypeStruct((5, B_pad), jnp.float32),
        grid=(n_tiles,),
        in_specs=[
            pl.BlockSpec((f_in, TB), lambda i: (0, i)),   # x^T tiled over batch (lanes)
            full(w1), full(b1),
            full(w2), full(b2),
            full(w3), full(b3),
            full(w4), full(b4),
            full(t),
        ],
        out_specs=pl.BlockSpec((5, TB), lambda i: (0, i)),
        compiler_params=pltpu.CompilerParams(
            dimension_semantics=("parallel",),            # batch tiles split across TCs (v7x)
        ),
        cost_estimate=pl.CostEstimate(
            flops=flops, transcendentals=5 * B_pad, bytes_accessed=bytes_accessed),
    )(xT, w1, b1, w2, b2, w3, b3, w4, b4, t)

    return outT[:, :B].T                                   # back to (B, 5)


def init_params(key):
    """Deterministic synthetic init (PyTorch-style uniform ranges, (out,in) weights)."""
    ks = jax.random.split(key, 9)

    def linear(kw, kb, fan_in, fan_out):
        bound = 1.0 / jnp.sqrt(fan_in)
        w = jax.random.uniform(kw, (fan_out, fan_in), jnp.float32, -bound, bound)
        b = jax.random.uniform(kb, (fan_out,), jnp.float32, -bound, bound)
        return w, b

    w1, b1 = linear(ks[0], ks[1], 20, 23)
    w2, b2 = linear(ks[2], ks[3], 23, 23)
    w3, b3 = linear(ks[4], ks[5], 23, 20)
    w4, b4 = linear(ks[6], ks[7], 20, 5)
    # self.test_tensor = torch.rand(1, 5)  -> uniform [0, 1)
    t = jax.random.uniform(ks[8], (1, 5), jnp.float32, 0.0, 1.0)
    return dict(w1=w1, b1=b1, w2=w2, b2=b2, w3=w3, b3=b3, w4=w4, b4=b4, t=t)


def reference_forward(x, p):
    h = jnp.maximum(x @ p["w1"].T + p["b1"], 0.0)
    h = jnp.maximum(h @ p["w2"].T + p["b2"], 0.0)
    h = jnp.maximum(h @ p["w3"].T + p["b3"], 0.0)
    return jax.nn.sigmoid(h @ p["w4"].T + p["b4"]) + p["t"]


if __name__ == "__main__":
    key = jax.random.PRNGKey(0)
    kx, kp = jax.random.split(key)
    params = init_params(kp)
    x = jax.random.normal(kx, (8, 20), jnp.float32)

    out = normal_model_forward(x, params)
    out = jax.block_until_ready(out)

    ref = reference_forward(x, params)
    assert out.shape == (8, 5)
    assert jnp.allclose(out, ref, atol=1e-5, rtol=1e-5), "mismatch vs JAX reference"
    print("KERNEL_OK")
</pallas_src>

<mosaic_0001>
module attributes {stable_mosaic.version = 11 : i64} {
  func.func @mlp_kernel(%arg0: i32, %arg1: memref<20x128xf32, #tpu.memory_space<vmem>>, %arg2: memref<23x20xf32, #tpu.memory_space<vmem>>, %arg3: memref<23x1xf32, #tpu.memory_space<vmem>>, %arg4: memref<23x23xf32, #tpu.memory_space<vmem>>, %arg5: memref<23x1xf32, #tpu.memory_space<vmem>>, %arg6: memref<20x23xf32, #tpu.memory_space<vmem>>, %arg7: memref<20x1xf32, #tpu.memory_space<vmem>>, %arg8: memref<5x20xf32, #tpu.memory_space<vmem>>, %arg9: memref<5x1xf32, #tpu.memory_space<vmem>>, %arg10: memref<5x1xf32, #tpu.memory_space<vmem>>, %arg11: memref<5x128xf32, #tpu.memory_space<vmem>>) attributes {dimension_semantics = [#tpu.dimension_semantics<parallel>], iteration_bounds = array<i64: 1>, scalar_prefetch = 0 : i64, scratch_operands = 0 : i64, tpu.core_type = #tpu.core_type<tc>, window_params = [{transform_indices = @transform_0, window_bounds = array<i64: 20, 128>}, {pipeline_mode = #tpu.pipeline_mode<synchronous>, transform_indices = @transform_1, window_bounds = array<i64: 23, 20>}, {pipeline_mode = #tpu.pipeline_mode<synchronous>, transform_indices = @transform_2, window_bounds = array<i64: 23, 1>}, {pipeline_mode = #tpu.pipeline_mode<synchronous>, transform_indices = @transform_3, window_bounds = array<i64: 23, 23>}, {pipeline_mode = #tpu.pipeline_mode<synchronous>, transform_indices = @transform_4, window_bounds = array<i64: 23, 1>}, {pipeline_mode = #tpu.pipeline_mode<synchronous>, transform_indices = @transform_5, window_bounds = array<i64: 20, 23>}, {pipeline_mode = #tpu.pipeline_mode<synchronous>, transform_indices = @transform_6, window_bounds = array<i64: 20, 1>}, {pipeline_mode = #tpu.pipeline_mode<synchronous>, transform_indices = @transform_7, window_bounds = array<i64: 5, 20>}, {pipeline_mode = #tpu.pipeline_mode<synchronous>, transform_indices = @transform_8, window_bounds = array<i64: 5, 1>}, {pipeline_mode = #tpu.pipeline_mode<synchronous>, transform_indices = @transform_9, window_bounds = array<i64: 5, 1>}, {transform_indices = @transform_10, window_bounds = array<i64: 5, 128>}]} {
    %c0 = arith.constant 0 : index
    %c0_0 = arith.constant 0 : index
    %0 = vector.load %arg1[%c0, %c0_0] : memref<20x128xf32, #tpu.memory_space<vmem>>, vector<20x128xf32>
    %c0_1 = arith.constant 0 : index
    %c0_2 = arith.constant 0 : index
    %1 = vector.load %arg2[%c0_1, %c0_2] : memref<23x20xf32, #tpu.memory_space<vmem>>, vector<23x20xf32>
    %cst = arith.constant dense<0.000000e+00> : vector<23x128xf32>
    %2 = tpu.matmul %1, %0, %cst {dimension_numbers = #tpu.dot_dimension_numbers<[1], [0], [0], [1], [0, 0, 1, 1], [], []>} : vector<23x20xf32>, vector<20x128xf32>, vector<23x128xf32> -> vector<23x128xf32>
    %c0_3 = arith.constant 0 : index
    %c0_4 = arith.constant 0 : index
    %3 = vector.load %arg3[%c0_3, %c0_4] : memref<23x1xf32, #tpu.memory_space<vmem>>, vector<23x1xf32>
    %4 = vector.broadcast %3 : vector<23x1xf32> to vector<23x128xf32>
    %5 = arith.addf %2, %4 : vector<23x128xf32>
    %cst_5 = arith.constant 0.000000e+00 : f32
    %6 = vector.broadcast %cst_5 : f32 to vector<23x128xf32>
    %7 = arith.maximumf %5, %6 : vector<23x128xf32>
    %c0_6 = arith.constant 0 : index
    %c0_7 = arith.constant 0 : index
    %8 = vector.load %arg4[%c0_6, %c0_7] : memref<23x23xf32, #tpu.memory_space<vmem>>, vector<23x23xf32>
    %cst_8 = arith.constant dense<0.000000e+00> : vector<23x128xf32>
    %9 = tpu.matmul %8, %7, %cst_8 {dimension_numbers = #tpu.dot_dimension_numbers<[1], [0], [0], [1], [0, 0, 1, 1], [], []>} : vector<23x23xf32>, vector<23x128xf32>, vector<23x128xf32> -> vector<23x128xf32>
    %c0_9 = arith.constant 0 : index
    %c0_10 = arith.constant 0 : index
    %10 = vector.load %arg5[%c0_9, %c0_10] : memref<23x1xf32, #tpu.memory_space<vmem>>, vector<23x1xf32>
    %11 = vector.broadcast %10 : vector<23x1xf32> to vector<23x128xf32>
    %12 = arith.addf %9, %11 : vector<23x128xf32>
    %cst_11 = arith.constant 0.000000e+00 : f32
    %13 = vector.broadcast %cst_11 : f32 to vector<23x128xf32>
    %14 = arith.maximumf %12, %13 : vector<23x128xf32>
    %c0_12 = arith.constant 0 : index
    %c0_13 = arith.constant 0 : index
    %15 = vector.load %arg6[%c0_12, %c0_13] : memref<20x23xf32, #tpu.memory_space<vmem>>, vector<20x23xf32>
    %cst_14 = arith.constant dense<0.000000e+00> : vector<20x128xf32>
    %16 = tpu.matmul %15, %14, %cst_14 {dimension_numbers = #tpu.dot_dimension_numbers<[1], [0], [0], [1], [0, 0, 1, 1], [], []>} : vector<20x23xf32>, vector<23x128xf32>, vector<20x128xf32> -> vector<20x128xf32>
    %c0_15 = arith.constant 0 : index
    %c0_16 = arith.constant 0 : index
    %17 = vector.load %arg7[%c0_15, %c0_16] : memref<20x1xf32, #tpu.memory_space<vmem>>, vector<20x1xf32>
    %18 = vector.broadcast %17 : vector<20x1xf32> to vector<20x128xf32>
    %19 = arith.addf %16, %18 : vector<20x128xf32>
    %cst_17 = arith.constant 0.000000e+00 : f32
    %20 = vector.broadcast %cst_17 : f32 to vector<20x128xf32>
    %21 = arith.maximumf %19, %20 : vector<20x128xf32>
    %c0_18 = arith.constant 0 : index
    %c0_19 = arith.constant 0 : index
    %22 = vector.load %arg8[%c0_18, %c0_19] : memref<5x20xf32, #tpu.memory_space<vmem>>, vector<5x20xf32>
    %cst_20 = arith.constant dense<0.000000e+00> : vector<5x128xf32>
    %23 = tpu.matmul %22, %21, %cst_20 {dimension_numbers = #tpu.dot_dimension_numbers<[1], [0], [0], [1], [0, 0, 1, 1], [], []>} : vector<5x20xf32>, vector<20x128xf32>, vector<5x128xf32> -> vector<5x128xf32>
    %c0_21 = arith.constant 0 : index
    %c0_22 = arith.constant 0 : index
    %24 = vector.load %arg9[%c0_21, %c0_22] : memref<5x1xf32, #tpu.memory_space<vmem>>, vector<5x1xf32>
    %25 = vector.broadcast %24 : vector<5x1xf32> to vector<5x128xf32>
    %26 = arith.addf %23, %25 : vector<5x128xf32>
    %27 = arith.negf %26 : vector<5x128xf32>
    %28 = math.exp %27 : vector<5x128xf32>
    %cst_23 = arith.constant 1.000000e+00 : f32
    %29 = vector.broadcast %cst_23 : f32 to vector<5x128xf32>
    %30 = arith.addf %29, %28 : vector<5x128xf32>
    %31 = arith.divf %29, %30 : vector<5x128xf32>
    %c0_24 = arith.constant 0 : index
    %c0_25 = arith.constant 0 : index
    %32 = vector.load %arg10[%c0_24, %c0_25] : memref<5x1xf32, #tpu.memory_space<vmem>>, vector<5x1xf32>
    %33 = vector.broadcast %32 : vector<5x1xf32> to vector<5x128xf32>
    %34 = arith.addf %31, %33 : vector<5x128xf32>
    %c0_26 = arith.constant 0 : index
    %c0_27 = arith.constant 0 : index
    %35 = vector.load %arg11[%c0_26, %c0_27] : memref<5x128xf32, #tpu.memory_space<vmem>>, vector<5x128xf32>
    tpu.vector_store %arg11[%c0_26, %c0_27], %34 {strides = array<i32>} : memref<5x128xf32, #tpu.memory_space<vmem>>, vector<5x128xf32>,
    return
  }
  func.func @transform_0(%arg0: i32) -> (i32, i32) {
    %c0_i32 = arith.constant 0 : i32
    %c0_i32_0 = arith.constant 0 : i32
    return %c0_i32, %arg0 : i32, i32
  }
  func.func @transform_1(%arg0: i32) -> (i32, i32) {
    %c0_i32 = arith.constant 0 : i32
    %c0_i32_0 = arith.constant 0 : i32
    %c0_i32_1 = arith.constant 0 : i32
    return %c0_i32, %c0_i32_0 : i32, i32
  }
  func.func @transform_2(%arg0: i32) -> (i32, i32) {
    %c0_i32 = arith.constant 0 : i32
    %c0_i32_0 = arith.constant 0 : i32
    %c0_i32_1 = arith.constant 0 : i32
    return %c0_i32, %c0_i32_0 : i32, i32
  }
  func.func @transform_3(%arg0: i32) -> (i32, i32) {
    %c0_i32 = arith.constant 0 : i32
    %c0_i32_0 = arith.constant 0 : i32
    %c0_i32_1 = arith.constant 0 : i32
    return %c0_i32, %c0_i32_0 : i32, i32
  }
  func.func @transform_4(%arg0: i32) -> (i32, i32) {
    %c0_i32 = arith.constant 0 : i32
    %c0_i32_0 = arith.constant 0 : i32
    %c0_i32_1 = arith.constant 0 : i32
    return %c0_i32, %c0_i32_0 : i32, i32
  }
  func.func @transform_5(%arg0: i32) -> (i32, i32) {
    %c0_i32 = arith.constant 0 : i32
    %c0_i32_0 = arith.constant 0 : i32
    %c0_i32_1 = arith.constant 0 : i32
    return %c0_i32, %c0_i32_0 : i32, i32
  }
  func.func @transform_6(%arg0: i32) -> (i32, i32) {
    %c0_i32 = arith.constant 0 : i32
    %c0_i32_0 = arith.constant 0 : i32
    %c0_i32_1 = arith.constant 0 : i32
    return %c0_i32, %c0_i32_0 : i32, i32
  }
  func.func @transform_7(%arg0: i32) -> (i32, i32) {
    %c0_i32 = arith.constant 0 : i32
    %c0_i32_0 = arith.constant 0 : i32
    %c0_i32_1 = arith.constant 0 : i32
    return %c0_i32, %c0_i32_0 : i32, i32
  }
  func.func @transform_8(%arg0: i32) -> (i32, i32) {
    %c0_i32 = arith.constant 0 : i32
    %c0_i32_0 = arith.constant 0 : i32
    %c0_i32_1 = arith.constant 0 : i32
    return %c0_i32, %c0_i32_0 : i32, i32
  }
  func.func @transform_9(%arg0: i32) -> (i32, i32) {
    %c0_i32 = arith.constant 0 : i32
    %c0_i32_0 = arith.constant 0 : i32
    %c0_i32_1 = arith.constant 0 : i32
    return %c0_i32, %c0_i32_0 : i32, i32
  }
  func.func @transform_10(%arg0: i32) -> (i32, i32) {
    %c0_i32 = arith.constant 0 : i32
    %c0_i32_0 = arith.constant 0 : i32
    return %c0_i32, %arg0 : i32, i32
  }
}

</mosaic_0001>

<llo_original>
// kernel: tpu_custom_call.1
$region0: #{tpu_custom_call.1}
  #allocation0 [shape = 'u32[]', space=smem, size = 0x4, offset = 0x4, fixed_abs, tag = 'smem constant byte address 0x4 - core index']
  #allocation1 [shape = 'u32[72,128]{1,0:T(1,128)}', space=vmem, size = 0x9000, scoped, tag = 'internal scratch']
  %s0 = inlined_call_operand.vmem [shape: f32[20,128], index: 0, kind: input, shape index: {}]
  %s1 = inlined_call_operand.vmem [shape: f32[23,20], index: 1, kind: input, shape index: {}]
  %s2 = inlined_call_operand.vmem [shape: f32[23,1], index: 2, kind: input, shape index: {}]
  %s3 = inlined_call_operand.vmem [shape: f32[23,23], index: 3, kind: input, shape index: {}]
  %s4 = inlined_call_operand.vmem [shape: f32[23,1], index: 4, kind: input, shape index: {}]
  %s5 = inlined_call_operand.vmem [shape: f32[20,23], index: 5, kind: input, shape index: {}]
  %s6 = inlined_call_operand.vmem [shape: f32[20,1], index: 6, kind: input, shape index: {}]
  %s7 = inlined_call_operand.hbm [shape: f32[5,20], index: 7, kind: input, shape index: {}]
  %s8 = inlined_call_operand.vmem [shape: f32[5,1], index: 8, kind: input, shape index: {}]
  %s9 = inlined_call_operand.vmem [shape: f32[5,1], index: 9, kind: input, shape index: {}]
  %s10 = inlined_call_operand.hbm [shape: f32[5,128], index: 10, kind: output, shape index: {}]
  %s11 = sld [smem:[#allocation0]]
  $region54: #{tpu_custom_call.1} parent=0
    _
  %s13 = ssub.s32 1, %s11
  %s14 = scalar_select 0, %s13, %s11
  $region1: #{tpu_custom_call.1} parent=0
    #allocation2 [shape = 'u8[4096]{0}', space=vmem, size = 0x1000, scoped, tag = 'input window, operand 7, single buffered']
    #allocation3 [shape = 's32[1]{0}', space=sflag, size = 0x4, scoped, tag = 'scoped memory for tpu_custom_call.1']
    #allocation4 [shape = 's32[1]{0}', space=sflag, size = 0x4, scoped, tag = 'scoped memory for tpu_custom_call.1']
    #allocation5 [shape = 'u8[4096]{0}', space=vmem, size = 0x1000, scoped, tag = 'output window, operand 0, single buffered']
    %15 = vsyncpa [#allocation3], 0
    %16 = vsyncpa [#allocation4], 0
    // Predicated region
    $region2: #{tpu_custom_call.1} parent=1 // pred_check
      _
    $region3: #{tpu_custom_call.1} parent=1 // pred_check_branch
      %18 = sbr.rel (0) target = $region5
    $region4: #{tpu_custom_call.1} parent=1 // pred_region
      _
    $region5: #{tpu_custom_call.1} parent=1 // pred_fallthru
      _
    // Predicated region
    $region6: #{tpu_custom_call.1} parent=1 // pred_check
      _
    $region7: #{tpu_custom_call.1} parent=1 // pred_check_branch
      %20 = sbr.rel (0) target = $region9
    $region8: #{tpu_custom_call.1} parent=1 // pred_region
      _
    $region9: #{tpu_custom_call.1} parent=1 // pred_fallthru
      _
    // Predicated region
    $region10: #{tpu_custom_call.1} parent=1 // pred_check
      _
    $region11: #{tpu_custom_call.1} parent=1 // pred_check_branch
      %22 = sbr.rel (0) target = $region13
    $region12: #{tpu_custom_call.1} parent=1 // pred_region
      _
    $region13: #{tpu_custom_call.1} parent=1 // pred_fallthru
      _
    // Predicated region
    $region14: #{tpu_custom_call.1} parent=1 // pred_check
      _
    $region15: #{tpu_custom_call.1} parent=1 // pred_check_branch
      %24 = sbr.rel (0) target = $region17
    $region16: #{tpu_custom_call.1} parent=1 // pred_region
      _
    $region17: #{tpu_custom_call.1} parent=1 // pred_fallthru
      _
    // Predicated region
    $region18: #{tpu_custom_call.1} parent=1 // pred_check
      _
    $region19: #{tpu_custom_call.1} parent=1 // pred_check_branch
      %26 = sbr.rel (0) target = $region21
    $region20: #{tpu_custom_call.1} parent=1 // pred_region
      _
    $region21: #{tpu_custom_call.1} parent=1 // pred_fallthru
      _
    // Predicated region
    $region22: #{tpu_custom_call.1} parent=1 // pred_check
      _
    $region23: #{tpu_custom_call.1} parent=1 // pred_check_branch
      %28 = sbr.rel (0) target = $region25
    $region24: #{tpu_custom_call.1} parent=1 // pred_region
      _
    $region25: #{tpu_custom_call.1} parent=1 // pred_fallthru
      _
    // Predicated region
    $region26: #{tpu_custom_call.1} parent=1 // pred_check
      _
    $region27: #{tpu_custom_call.1} parent=1 // pred_check_branch
      %30 = sbr.rel (0) target = $region29
    $region28: #{tpu_custom_call.1} parent=1 // pred_region
      _
    $region29: #{tpu_custom_call.1} parent=1 // pred_fallthru
      _
    // Predicated region
    $region30: #{tpu_custom_call.1} parent=1 // pred_check
      _
    $region31: #{tpu_custom_call.1} parent=1 // pred_check_branch
      %32 = sbr.rel (0) target = $region33
    $region32: #{tpu_custom_call.1} parent=1 // pred_region
      %34 = vsyncadd [#allocation3], 0
      %s36 = sshll.u32 %s7, 4
      %s37 = int_to_ptr.hbm [resolvable:$true] %s36
      %s38 = sshll.u32 [#allocation2], 4
      %s39 = int_to_ptr.vmem [resolvable:$true] %s38
      %41 = dma.hbm_to_vmem [thread:$0]  %s37, 128, %s39, [#allocation3]
    $region33: #{tpu_custom_call.1} parent=1 // pred_fallthru
      _
    // Predicated region
    $region34: #{tpu_custom_call.1} parent=1 // pred_check
      _
    $region35: #{tpu_custom_call.1} parent=1 // pred_check_branch
      %43 = sbr.rel (0) target = $region37
    $region36: #{tpu_custom_call.1} parent=1 // pred_region
      _
    $region37: #{tpu_custom_call.1} parent=1 // pred_fallthru
      _
    // Predicated region
    $region38: #{tpu_custom_call.1} parent=1 // pred_check
      _
    $region39: #{tpu_custom_call.1} parent=1 // pred_check_branch
      %45 = sbr.rel (0) target = $region41
    $region40: #{tpu_custom_call.1} parent=1 // pred_region
      _
    $region41: #{tpu_custom_call.1} parent=1 // pred_fallthru
      _
    // Predicated region
    $region42: #{tpu_custom_call.1} parent=1 // pred_check
      _
    $region43: #{tpu_custom_call.1} parent=1 // pred_check_branch
      %47 = sbr.rel (0) target = $region45
    $region44: #{tpu_custom_call.1} parent=1 // pred_region
      %49 = dma.done [#allocation3], 128
    $region45: #{tpu_custom_call.1} parent=1 // pred_fallthru
      _
    %v50 = vld [vmem:[%s0] sm:$0xff]
    %v51 = vld [vmem:[%s0 + $0x8] sm:$0xff]
    %v52 = vld [vmem:[%s0 + $0x10] sm:$0xf]
    %v53 = vld [vmem:[%s1] sm:$0xff]
    %v54 = vld [vmem:[%s1 + $0x8] sm:$0xff]
    %v55 = vld [vmem:[%s1 + $0x10] sm:$0x7f]
    %v56 = vld [vmem:[%s2] sm:$0xff]
    %v57 = vld [vmem:[%s2 + $0x8] sm:$0xff]
    %v58 = vld [vmem:[%s2 + $0x10] sm:$0x7f]
    %60 = vset.pattern.permute.xlu0 0
    %61 = vperm.xlu0 %60, %v56
    %v62 = vpop.permute.xlu0 %61
    %65 = vset.pattern.permute.xlu0 0
    %66 = vperm.xlu0 %65, %v57
    %v67 = vpop.permute.xlu0 %66
    %70 = vset.pattern.permute.xlu0 0
    %71 = vperm.xlu0 %70, %v58
    %v72 = vpop.permute.xlu0 %71
    %vm74 = vcmask 162816
    %v76 = vsel %vm74, %v53, 0
    %v79 = vsel %vm74, %v54, 0
    %v82 = vsel %vm74, %v55, 0
    %vm84 = vcmask 1043456
    %v86 = vsel %vm84, %v52, 0
    %88 = vmatpush.msra.mxu0 0.0
    %89 = vmatpush.msra.mxu0 0.0
    %90 = vmatpush.msra.mxu0 0.0
    %91 = vmatpush.msra.mxu0 0.0
    %92 = vmatpush.msra.mxu0 0.0
    %93 = vmatpush.msra.mxu0 0.0
    %94 = vmatpush.msra.mxu0 0.0
    %95 = vmatpush.msra.mxu0 0.0
    %96 = vmatpush.msra.mxu0 0.0
    %97 = vmatpush.msra.mxu0 0.0
    %98 = vmatpush.msra.mxu0 0.0
    %99 = vmatpush.msra.mxu0 0.0
    %100 = vmatpush.msra.mxu0 0.0
    %101 = vmatpush.msra.mxu0 %v86
    %102 = vmatpush.msra.mxu0 %v51
    %103 = vmatpush.msra.mxu0 %v50
    %104 = vmatmul.f32.gmra.mxu0 %v76
    %v105 = vpop.f32.mrf.mxu0
    %v106 = vadd.f32 %v62, %v105
    %107 = vmatmul.f32.gmra.mxu0 %v79
    %v108 = vpop.f32.mrf.mxu0
    %v109 = vadd.f32 %v67, %v108
    %110 = vmatmul.f32.gmra.mxu0 %v82
    %v111 = vpop.f32.mrf.mxu0
    %v112 = vadd.f32 %v72, %v111
    %113 = vdwg.mxu0
    %v114 = vmax.f32 %v106, 0.0
    %v115 = vmax.f32 %v109, 0.0
    %v116 = vmax.f32 %v112, 0.0
    %v117 = vld [vmem:[%s3] sm:$0xff]
    %v118 = vld [vmem:[%s3 + $0x8] sm:$0xff]
    %v119 = vld [vmem:[%s3 + $0x10] sm:$0x7f]
    %v120 = vld [vmem:[%s4] sm:$0xff]
    %v121 = vld [vmem:[%s4 + $0x8] sm:$0xff]
    %v122 = vld [vmem:[%s4 + $0x10] sm:$0x7f]
    %124 = vset.pattern.permute.xlu0 0
    %125 = vperm.xlu0 %124, %v120
    %v126 = vpop.permute.xlu0 %125
    %129 = vset.pattern.permute.xlu0 0
    %130 = vperm.xlu0 %129, %v121
    %v131 = vpop.permute.xlu0 %130
    %134 = vset.pattern.permute.xlu0 0
    %135 = vperm.xlu0 %134, %v122
    %v136 = vpop.permute.xlu0 %135
    %vm138 = vcmask 187392
    %v140 = vsel %vm138, %v117, 0
    %v143 = vsel %vm138, %v118, 0
    %v146 = vsel %vm138, %v119, 0
    %vm148 = vcmask 1046528
    %v150 = vsel %vm148, %v116, 0
    %152 = vmatpush.msra.mxu0 0.0
    %153 = vmatpush.msra.mxu0 0.0
    %154 = vmatpush.msra.mxu0 0.0
    %155 = vmatpush.msra.mxu0 0.0
    %156 = vmatpush.msra.mxu0 0.0
    %157 = vmatpush.msra.mxu0 0.0
    %158 = vmatpush.msra.mxu0 0.0
    %159 = vmatpush.msra.mxu0 0.0
    %160 = vmatpush.msra.mxu0 0.0
    %161 = vmatpush.msra.mxu0 0.0
    %162 = vmatpush.msra.mxu0 0.0
    %163 = vmatpush.msra.mxu0 0.0
    %164 = vmatpush.msra.mxu0 0.0
    %165 = vmatpush.msra.mxu0 %v150
    %166 = vmatpush.msra.mxu0 %v115
    %167 = vmatpush.msra.mxu0 %v114
    %168 = vmatmul.f32.gmra.mxu0 %v140
    %v169 = vpop.f32.mrf.mxu0
    %v170 = vadd.f32 %v126, %v169
    %171 = vmatmul.f32.gmra.mxu0 %v143
    %v172 = vpop.f32.mrf.mxu0
    %v173 = vadd.f32 %v131, %v172
    %174 = vmatmul.f32.gmra.mxu0 %v146
    %v175 = vpop.f32.mrf.mxu0
    %v176 = vadd.f32 %v136, %v175
    %177 = vdwg.mxu0
    %v178 = vmax.f32 %v170, 0.0
    %v179 = vmax.f32 %v173, 0.0
    %v180 = vmax.f32 %v176, 0.0
    %v181 = vld [vmem:[%s5] sm:$0xff]
    %v182 = vld [vmem:[%s5 + $0x8] sm:$0xff]
    %v183 = vld [vmem:[%s5 + $0x10] sm:$0xf]
    %v184 = vld [vmem:[%s6] sm:$0xff]
    %v185 = vld [vmem:[%s6 + $0x8] sm:$0xff]
    %v186 = vld [vmem:[%s6 + $0x10] sm:$0xf]
    %188 = vset.pattern.permute.xlu0 0
    %189 = vperm.xlu0 %188, %v184
    %v190 = vpop.permute.xlu0 %189
    %193 = vset.pattern.permute.xlu0 0
    %194 = vperm.xlu0 %193, %v185
    %v195 = vpop.permute.xlu0 %194
    %198 = vset.pattern.permute.xlu0 0
    %199 = vperm.xlu0 %198, %v186
    %v200 = vpop.permute.xlu0 %199
    %v203 = vsel %vm138, %v181, 0
    %v206 = vsel %vm138, %v182, 0
    %v209 = vsel %vm138, %v183, 0
    %v212 = vsel %vm148, %v180, 0
    %214 = vmatpush.msra.mxu0 0.0
    %215 = vmatpush.msra.mxu0 0.0
    %216 = vmatpush.msra.mxu0 0.0
    %217 = vmatpush.msra.mxu0 0.0
    %218 = vmatpush.msra.mxu0 0.0
    %219 = vmatpush.msra.mxu0 0.0
    %220 = vmatpush.msra.mxu0 0.0
    %221 = vmatpush.msra.mxu0 0.0
    %222 = vmatpush.msra.mxu0 0.0
    %223 = vmatpush.msra.mxu0 0.0
    %224 = vmatpush.msra.mxu0 0.0
    %225 = vmatpush.msra.mxu0 0.0
    %226 = vmatpush.msra.mxu0 0.0
    %227 = vmatpush.msra.mxu0 %v212
    %228 = vmatpush.msra.mxu0 %v179
    %229 = vmatpush.msra.mxu0 %v178
    %230 = vmatmul.f32.gmra.mxu0 %v203
    %v231 = vpop.f32.mrf.mxu0
    %v232 = vadd.f32 %v190, %v231
    %233 = vmatmul.f32.gmra.mxu0 %v206
    %v234 = vpop.f32.mrf.mxu0
    %v235 = vadd.f32 %v195, %v234
    %236 = vmatmul.f32.gmra.mxu0 %v209
    %v237 = vpop.f32.mrf.mxu0
    %v238 = vadd.f32 %v200, %v237
    %239 = vdwg.mxu0
    %v240 = vmax.f32 %v232, 0.0
    %v241 = vmax.f32 %v235, 0.0
    %v242 = vmax.f32 %v238, 0.0
    %v243 = vld [vmem:[#allocation2] sm:$0x1f]
    %v244 = vld [vmem:[%s8] sm:$0x1f]
    %246 = vset.pattern.permute.xlu0 0
    %247 = vperm.xlu0 %246, %v244
    %v248 = vpop.permute.xlu0 %247
    %v251 = vsel %vm74, %v243, 0
    %v254 = vsel %vm84, %v242, 0
    %256 = vmatpush.msra.mxu0 0.0
    %257 = vmatpush.msra.mxu0 0.0
    %258 = vmatpush.msra.mxu0 0.0
    %259 = vmatpush.msra.mxu0 0.0
    %260 = vmatpush.msra.mxu0 0.0
    %261 = vmatpush.msra.mxu0 0.0
    %262 = vmatpush.msra.mxu0 0.0
    %263 = vmatpush.msra.mxu0 0.0
    %264 = vmatpush.msra.mxu0 0.0
    %265 = vmatpush.msra.mxu0 0.0
    %266 = vmatpush.msra.mxu0 0.0
    %267 = vmatpush.msra.mxu0 0.0
    %268 = vmatpush.msra.mxu0 0.0
    %269 = vmatpush.msra.mxu0 %v254
    %270 = vmatpush.msra.mxu0 %v241
    %271 = vmatpush.msra.mxu0 %v240
    %272 = vmatmul.f32.gmra.mxu0 %v251
    %v273 = vpop.f32.mrf.mxu0
    %v274 = vadd.f32 %v248, %v273
    %275 = vdwg.mxu0
    %v276 = vxor.u32 %v274, 2147483648
    %v277 = vmul.f32 %v276, 1.442695
    %v278 = vpow.pop %v277
    %v279 = vadd.f32 %v278, 1.0
    %v280 = vrcp.pop %v279
    %v281 = vmul.f32 %v279, %v280
    %v282 = vsub.f32 1.0, %v281
    %v283 = vmul.f32 %v280, %v282
    %v284 = vadd.f32 %v280, %v283
    %vm285 = vweird.f32 %v279
    %vm286 = vweird.f32 %v280
    %vm287 = vmor %vm285, %vm286
    %v288 = vsel %vm287, %v280, %v284
    %v289 = vand.u32 2147483647, %v279
    %vm290 = vcmp.eq.f32.partialorder %v289, 8.507059e+37
    %v291 = vand.u32 %v279, 2147483648
    %v292 = vor.u32 1.1754944e-38, %v291
    %v293 = vsel %vm290, %v292, %v288
    %v294 = vmul.f32 1.0, %v293
    %v295 = vld [vmem:[%s9] sm:$0x1f]
    %297 = vset.pattern.permute.xlu0 0
    %298 = vperm.xlu0 %297, %v295
    %v299 = vpop.permute.xlu0 %298
    %v301 = vadd.f32 %v294, %v299
    %302 = vst [vmem:[#allocation5] sm:$0x1f] %v301
    // Predicated region
    $region46: #{tpu_custom_call.1} parent=1 // pred_check
      _
    $region47: #{tpu_custom_call.1} parent=1 // pred_check_branch
      %304 = sbr.rel (0) target = $region49
    $region48: #{tpu_custom_call.1} parent=1 // pred_region
      %306 = vsyncadd [#allocation4], 0
      %s308 = sshll.u32 [#allocation5], 4
      %s309 = int_to_ptr.vmem [resolvable:$true] %s308
      %s310 = sshll.u32 %s10, 4
      %s311 = int_to_ptr.hbm [resolvable:$true] %s310
      %313 = dma.vmem_to_hbm [thread:$0]  %s309, 128, %s311, [#allocation4]
    $region49: #{tpu_custom_call.1} parent=1 // pred_fallthru
      _
    // Predicated region
    $region50: #{tpu_custom_call.1} parent=1 // pred_check
      _
    $region51: #{tpu_custom_call.1} parent=1 // pred_check_branch
      %315 = sbr.rel (0) target = $region53
    $region52: #{tpu_custom_call.1} parent=1 // pred_region
      %317 = dma.done [#allocation4], 128
    $region53: #{tpu_custom_call.1} parent=1 // pred_fallthru
      _
    %318 = vsyncpa [#allocation3], 1
    %319 = vsyncpa [#allocation4], 1

</llo_original>
